<compile_context>
chip_gen: v5e
topology: v5e:2x2
jax: 0.10.0
libtpu: 0.0.40
codegen_flags: <defaults>
</compile_context>

<pallas_src>
import jax
import jax.numpy as jnp
from jax.experimental import pallas as pl
from jax.experimental.pallas import tpu as pltpu


_MASK_NEG = 1e30  # additive-mask magnitude (finite -> no NaN for fully-padded rows)


def _gelu_tanh(x):
    # tanh-form GELU: 0.5*x*(1 + tanh(sqrt(2/pi)*(x + 0.044715*x^3))).
    # ~6 VALU ops + 1 EUP tanh per element; |gelu_tanh - gelu_exact| < ~1e-3.
    c = 0.7978845608028654  # sqrt(2/pi)
    return 0.5 * x * (1.0 + jnp.tanh(c * (x + 0.044715 * x * x * x)))


def _attn_pool_kernel(h_ref, mask_ref,
                      w1_ref, b1_ref, g_ref, be_ref,
                      w2_ref, wfc_ref, bfc_ref,
                      out_ref):
    # One grid step == one batch tile of TB sequences.
    TB, S, H = h_ref.shape
    h3 = h_ref[...]                                   # (TB, S, H), MXU dtype (bf16 default)
    h2 = h3.reshape(TB * S, H)                        # layout-free: S % 8 == 0, H unchanged

    # --- attention[0]: Linear(H, H) over all TB*S rows (one MXU matmul, f32 acc) ---
    z = jnp.dot(h2, w1_ref[...], preferred_element_type=jnp.float32) + b1_ref[...]

    # --- attention[1]: LayerNorm(H) (f32 elementwise) ---
    mu = jnp.mean(z, axis=-1, keepdims=True)
    var = jnp.mean((z - mu) * (z - mu), axis=-1, keepdims=True)
    zn = (z - mu) * jax.lax.rsqrt(var + 1e-5) * g_ref[...] + be_ref[...]

    # --- attention[2]: GELU (tanh form; EUP tanh, VALU stays light) ---
    a = _gelu_tanh(zn)                                # (TB*S, H) f32

    # --- attention[3]: Linear(H, 1) as a lane reduction -> lane-major scores ---
    # (b2 is dropped: a per-row constant cancels exactly in the softmax.)
    a3 = a.reshape(TB, S, H)
    scores = jnp.sum(a3 * w2_ref[...], axis=-1)       # (TB, S), S on lanes

    # --- masked softmax over the sequence (lane) axis ---
    scores = scores + (mask_ref[...] - 1.0) * _MASK_NEG   # one fused mul-add, finite
    m = jnp.max(scores, axis=-1, keepdims=True)
    e = jnp.exp(scores - m)
    denom = jnp.sum(e, axis=-1, keepdims=True)
    wsm = e * pl.reciprocal(denom, approx=True)       # (TB, S), EUP reciprocal

    # --- attention_embeddings = sum_s w[b,s] * h[b,s,:]  (MXU, batched) ---
    emb = jnp.einsum('bqs,bsh->bqh',
                     wsm[:, None, :].astype(h3.dtype), h3,
                     preferred_element_type=jnp.float32).reshape(TB, H)

    # --- out = relu(fc(emb)); lane-dense (TB, Cpad) output block ---
    out = jnp.dot(emb.astype(wfc_ref.dtype), wfc_ref[...],
                  preferred_element_type=jnp.float32) + bfc_ref[...]
    out_ref[...] = jnp.maximum(out, 0.0).astype(out_ref.dtype)


def _default_vmem_limit_bytes():
    # v5e/v6e: 128 MiB physical VMEM -> ~64 MiB scoped; v7x: 64 MiB -> ~32 MiB.
    try:
        cap = pltpu.get_tpu_info().vmem_capacity_bytes
        return max(32 * 1024 * 1024, min(96 * 1024 * 1024, cap // 2))
    except Exception:
        return 48 * 1024 * 1024


def _pick_batch_tile(B, S, H, Cp, mxu_itemsize, vmem_limit_bytes):
    """Size the batch tile against the VMEM budget, counting the f32 intermediates."""
    # TB-independent blocks (double-buffered by the pipeline):
    #   w1 (H,H) + wfc (H,Cp) in MXU dtype; b1/gamma/beta/w2 (1,H) + bfc (1,Cp) in f32.
    weight_bytes = 2 * ((H * H + H * Cp) * mxu_itemsize + (4 * H + Cp) * 4)
    # Per-sequence bytes:
    #   hidden block, double-buffered:            2 * S * H * mxu_itemsize
    #   f32 intermediates z / zn / a (~3 live):   3 * S * H * 4
    #   mask/scores/softmax temps + out block:    ~(6*S + 2*Cp) * 4
    per_seq = S * H * (2 * mxu_itemsize + 3 * 4) + (6 * S + 2 * Cp) * 4
    budget = int(vmem_limit_bytes * 0.75) - weight_bytes   # ~25% headroom
    tb = max(1, budget // per_seq)
    return int(min(B, tb))


def bert_dot_attention_head(last_hidden, mask, params, *,
                            batch_tile=None,
                            mxu_dtype=jnp.bfloat16,
                            vmem_limit_bytes=None):
    """last_hidden: (B, S, H), mask: (B, S) int/float -> (B, C) f32.

    mxu_dtype=jnp.bfloat16 (default) feeds the MXU and the dominant hidden-block
    DMA in bf16; LayerNorm/GELU/softmax math stays f32 inside the kernel.  Use
    mxu_dtype=jnp.float32 for a tighter numerical match to the reference.
    """
    B, S, H = last_hidden.shape
    C = params["wfc"].shape[1]

    if vmem_limit_bytes is None:
        vmem_limit_bytes = _default_vmem_limit_bytes()

    # Lane-dense output: pad C up to a multiple of 128 (sliced off below).
    Cp = ((C + 127) // 128) * 128
    # Keep the (TB,S,H)<->(TB*S,H) reshapes layout-free: S must be a multiple of 8.
    S_pad = ((S + 7) // 8) * 8

    itemsize = jnp.dtype(mxu_dtype).itemsize
    if batch_tile is None:
        batch_tile = _pick_batch_tile(B, S_pad, H, Cp, itemsize, vmem_limit_bytes)

    if batch_tile >= B and B < 16:
        TB = B                          # batch too small to split across TensorCores
    else:
        # 8-aligned tile, capped so the grid has >=2 steps (v7x megacore needs >=2).
        TB = max(8, (min(batch_tile, (B + 1) // 2) // 8) * 8)
    B_pad = ((B + TB - 1) // TB) * TB

    hid = last_hidden.astype(mxu_dtype)
    maskf = mask.astype(jnp.float32)
    if B_pad != B or S_pad != S:
        # Padded sequence positions / batch rows get mask=0 -> zero softmax weight.
        hid = jnp.pad(hid, ((0, B_pad - B), (0, S_pad - S), (0, 0)))
        maskf = jnp.pad(maskf, ((0, B_pad - B), (0, S_pad - S)))

    w1 = params["w1"].astype(mxu_dtype)
    b1 = params["b1"].reshape(1, H).astype(jnp.float32)
    gamma = params["gamma"].reshape(1, H).astype(jnp.float32)
    beta = params["beta"].reshape(1, H).astype(jnp.float32)
    w2row = params["w2"].reshape(1, H).astype(jnp.float32)
    wfc = jnp.zeros((H, Cp), mxu_dtype).at[:, :C].set(params["wfc"].astype(mxu_dtype))
    bfc = jnp.zeros((1, Cp), jnp.float32).at[:, :C].set(params["bfc"].reshape(1, C))

    # Weight/bias blocks have constant index maps, so Pallas never re-fetches
    # them across grid steps.
    const2 = lambda i: (0, 0)
    in_specs = [
        pl.BlockSpec((TB, S_pad, H), lambda i: (i, 0, 0)),   # last_hidden_state tile
        pl.BlockSpec((TB, S_pad), lambda i: (i, 0)),         # mask tile (S on lanes)
        pl.BlockSpec((H, H), const2),                        # attention Linear 1 W
        pl.BlockSpec((1, H), const2),                        # attention Linear 1 b
        pl.BlockSpec((1, H), const2),                        # LayerNorm gamma
        pl.BlockSpec((1, H), const2),                        # LayerNorm beta
        pl.BlockSpec((1, H), const2),                        # attention Linear 2 W (row)
        pl.BlockSpec((H, Cp), const2),                       # fc W (C padded to 128 lanes)
        pl.BlockSpec((1, Cp), const2),                       # fc b
    ]
    out_spec = pl.BlockSpec((TB, Cp), lambda i: (i, 0))

    out = pl.pallas_call(
        _attn_pool_kernel,
        out_shape=jax.ShapeDtypeStruct((B_pad, Cp), jnp.float32),
        grid=(B_pad // TB,),
        in_specs=in_specs,
        out_specs=out_spec,
        compiler_params=pltpu.CompilerParams(
            dimension_semantics=("parallel",),   # batch tiles shard across v7x's 2 TCs
            vmem_limit_bytes=vmem_limit_bytes,
        ),
    )(hid, maskf, w1, b1, gamma, beta, w2row, wfc, bfc)

    return out[:B, :C]


def _reference(last_hidden, mask, params):
    # Pure-JAX reference of the same head (exact erf GELU, -inf mask softmax),
    # matching the PyTorch module semantics.
    z = last_hidden @ params["w1"] + params["b1"]
    mu = jnp.mean(z, axis=-1, keepdims=True)
    var = jnp.mean((z - mu) ** 2, axis=-1, keepdims=True)
    zn = (z - mu) * jax.lax.rsqrt(var + 1e-5) * params["gamma"] + params["beta"]
    a = jax.nn.gelu(zn, approximate=False)
    w = a @ params["w2"] + params["b2"]                       # (B, S, 1)
    w = jnp.where(mask[..., None] == 0, -jnp.inf, w)
    w = jax.nn.softmax(w, axis=1)
    emb = jnp.sum(w * last_hidden, axis=1)                    # (B, H)
    out = emb @ params["wfc"] + params["bfc"]
    return jnp.maximum(out, 0.0)


if __name__ == "__main__":
    B, S, H, C, VOCAB = 2, 8, 32, 4, 30

    key = jax.random.PRNGKey(0)
    keys = jax.random.split(key, 9)

    # Deterministic "parameters" (synthetic, not a checkpoint load).
    params = {
        "w1":    0.1 * jax.random.normal(keys[0], (H, H), jnp.float32),
        "b1":    0.05 * jax.random.normal(keys[5], (1, H), jnp.float32),
        "gamma": 1.0 + 0.05 * jax.random.normal(keys[8], (1, H), jnp.float32),
        "beta":  0.05 * jax.random.normal(keys[6], (1, H), jnp.float32),
        "w2":    0.1 * jax.random.normal(keys[1], (H, 1), jnp.float32),
        "b2":    jnp.zeros((1, 1), jnp.float32),
        "wfc":   0.1 * jax.random.normal(keys[2], (H, C), jnp.float32),
        "bfc":   0.05 * jax.random.normal(keys[7], (1, C), jnp.float32),
    }

    # Synthetic stand-in for the pretrained BERT backbone: deterministic
    # token-embedding lookup producing last_hidden_state.  (Glue, not kernel.)
    # TODO(synk): full BertModel encoder not reproducible without pretrained weights.
    context = jax.random.randint(keys[3], (B, S), 0, VOCAB, dtype=jnp.int32)
    emb_table = 0.5 * jax.random.normal(keys[4], (VOCAB, H), jnp.float32)
    last_hidden_state = emb_table[context]                    # (B, S, H)

    # Attention mask with some padding (each row keeps >=1 real token).
    mask = jnp.array([[1, 1, 1, 1, 1, 1, 0, 0],
                      [1, 1, 1, 1, 0, 0, 0, 0]], dtype=jnp.int32)

    # Default (bf16 MXU) path and f32 path.
    out_bf16 = bert_dot_attention_head(last_hidden_state, mask, params)
    out_f32 = bert_dot_attention_head(last_hidden_state, mask, params,
                                      mxu_dtype=jnp.float32)
    out_bf16 = jax.block_until_ready(out_bf16)
    out_f32 = jax.block_until_ready(out_f32)

    ref = _reference(last_hidden_state, mask, params)
    assert out_bf16.shape == (B, C)
    assert out_f32.shape == (B, C)
    # f32 path: tanh-GELU (vs exact erf) + EUP approx reciprocal in the softmax.
    assert jnp.allclose(out_f32, ref, atol=1e-2, rtol=1e-2), (out_f32, ref)
    # bf16 path: adds bf16 quantization of hidden/weights/attention weights.
    assert jnp.allclose(out_bf16, ref, atol=3e-2, rtol=3e-2), (out_bf16, ref)

    print("KERNEL_OK")
</pallas_src>

<mosaic_0001>
module attributes {stable_mosaic.version = 11 : i64} {
  func.func @_attn_pool_kernel(%arg0: i32, %arg1: memref<2x8x32xbf16, #tpu.memory_space<vmem>>, %arg2: memref<2x8xf32, #tpu.memory_space<vmem>>, %arg3: memref<32x32xbf16, #tpu.memory_space<vmem>>, %arg4: memref<1x32xf32, #tpu.memory_space<vmem>>, %arg5: memref<1x32xf32, #tpu.memory_space<vmem>>, %arg6: memref<1x32xf32, #tpu.memory_space<vmem>>, %arg7: memref<1x32xf32, #tpu.memory_space<vmem>>, %arg8: memref<32x128xbf16, #tpu.memory_space<vmem>>, %arg9: memref<1x128xf32, #tpu.memory_space<vmem>>, %arg10: memref<2x128xf32, #tpu.memory_space<vmem>>) attributes {dimension_semantics = [#tpu.dimension_semantics<parallel>], iteration_bounds = array<i64: 1>, scalar_prefetch = 0 : i64, scratch_operands = 0 : i64, tpu.core_type = #tpu.core_type<tc>, window_params = [{transform_indices = @transform_0, window_bounds = array<i64: 2, 8, 32>}, {transform_indices = @transform_1, window_bounds = array<i64: 2, 8>}, {pipeline_mode = #tpu.pipeline_mode<synchronous>, transform_indices = @transform_2, window_bounds = array<i64: 32, 32>}, {pipeline_mode = #tpu.pipeline_mode<synchronous>, transform_indices = @transform_3, window_bounds = array<i64: 1, 32>}, {pipeline_mode = #tpu.pipeline_mode<synchronous>, transform_indices = @transform_4, window_bounds = array<i64: 1, 32>}, {pipeline_mode = #tpu.pipeline_mode<synchronous>, transform_indices = @transform_5, window_bounds = array<i64: 1, 32>}, {pipeline_mode = #tpu.pipeline_mode<synchronous>, transform_indices = @transform_6, window_bounds = array<i64: 1, 32>}, {pipeline_mode = #tpu.pipeline_mode<synchronous>, transform_indices = @transform_7, window_bounds = array<i64: 32, 128>}, {pipeline_mode = #tpu.pipeline_mode<synchronous>, transform_indices = @transform_8, window_bounds = array<i64: 1, 128>}, {transform_indices = @transform_9, window_bounds = array<i64: 2, 128>}]} {
    %c0 = arith.constant 0 : index
    %c0_0 = arith.constant 0 : index
    %c0_1 = arith.constant 0 : index
    %0 = vector.load %arg1[%c0, %c0_0, %c0_1] : memref<2x8x32xbf16, #tpu.memory_space<vmem>>, vector<2x8x32xbf16>
    %1 = vector.shape_cast %0 : vector<2x8x32xbf16> to vector<16x32xbf16>
    %c0_2 = arith.constant 0 : index
    %c0_3 = arith.constant 0 : index
    %2 = vector.load %arg3[%c0_2, %c0_3] : memref<32x32xbf16, #tpu.memory_space<vmem>>, vector<32x32xbf16>
    %cst = arith.constant dense<0.000000e+00> : vector<16x32xf32>
    %3 = tpu.matmul %1, %2, %cst {dimension_numbers = #tpu.dot_dimension_numbers<[1], [0], [0], [1], [0, 0, 1, 1], [], []>} : vector<16x32xbf16>, vector<32x32xbf16>, vector<16x32xf32> -> vector<16x32xf32>
    %c0_4 = arith.constant 0 : index
    %c0_5 = arith.constant 0 : index
    %4 = vector.load %arg4[%c0_4, %c0_5] : memref<1x32xf32, #tpu.memory_space<vmem>>, vector<1x32xf32>
    %5 = vector.broadcast %4 : vector<1x32xf32> to vector<16x32xf32>
    %6 = arith.addf %3, %5 : vector<16x32xf32>
    %cst_6 = arith.constant dense<0.000000e+00> : vector<16xf32>
    %7 = vector.multi_reduction <add>, %6, %cst_6 [1] : vector<16x32xf32> to vector<16xf32>
    %8 = vector.shape_cast %7 : vector<16xf32> to vector<16x1xf32>
    %cst_7 = arith.constant 3.200000e+01 : f32
    %9 = vector.broadcast %cst_7 : f32 to vector<16x1xf32>
    %10 = arith.divf %8, %9 : vector<16x1xf32>
    %11 = vector.broadcast %10 : vector<16x1xf32> to vector<16x32xf32>
    %12 = arith.subf %6, %11 : vector<16x32xf32>
    %13 = vector.broadcast %10 : vector<16x1xf32> to vector<16x32xf32>
    %14 = arith.subf %6, %13 : vector<16x32xf32>
    %15 = arith.mulf %12, %14 : vector<16x32xf32>
    %cst_8 = arith.constant dense<0.000000e+00> : vector<16xf32>
    %16 = vector.multi_reduction <add>, %15, %cst_8 [1] : vector<16x32xf32> to vector<16xf32>
    %17 = vector.shape_cast %16 : vector<16xf32> to vector<16x1xf32>
    %cst_9 = arith.constant 3.200000e+01 : f32
    %18 = vector.broadcast %cst_9 : f32 to vector<16x1xf32>
    %19 = arith.divf %17, %18 : vector<16x1xf32>
    %20 = vector.broadcast %10 : vector<16x1xf32> to vector<16x32xf32>
    %21 = arith.subf %6, %20 : vector<16x32xf32>
    %cst_10 = arith.constant 9.99999974E-6 : f32
    %22 = vector.broadcast %cst_10 : f32 to vector<16x1xf32>
    %23 = arith.addf %19, %22 : vector<16x1xf32>
    %24 = math.rsqrt %23 : vector<16x1xf32>
    %25 = vector.broadcast %24 : vector<16x1xf32> to vector<16x32xf32>
    %26 = arith.mulf %21, %25 : vector<16x32xf32>
    %c0_11 = arith.constant 0 : index
    %c0_12 = arith.constant 0 : index
    %27 = vector.load %arg5[%c0_11, %c0_12] : memref<1x32xf32, #tpu.memory_space<vmem>>, vector<1x32xf32>
    %28 = vector.broadcast %27 : vector<1x32xf32> to vector<16x32xf32>
    %29 = arith.mulf %26, %28 : vector<16x32xf32>
    %c0_13 = arith.constant 0 : index
    %c0_14 = arith.constant 0 : index
    %30 = vector.load %arg6[%c0_13, %c0_14] : memref<1x32xf32, #tpu.memory_space<vmem>>, vector<1x32xf32>
    %31 = vector.broadcast %30 : vector<1x32xf32> to vector<16x32xf32>
    %32 = arith.addf %29, %31 : vector<16x32xf32>
    %cst_15 = arith.constant 5.000000e-01 : f32
    %33 = vector.broadcast %cst_15 : f32 to vector<16x32xf32>
    %34 = arith.mulf %33, %32 : vector<16x32xf32>
    %cst_16 = arith.constant 4.471500e-02 : f32
    %35 = vector.broadcast %cst_16 : f32 to vector<16x32xf32>
    %36 = arith.mulf %35, %32 : vector<16x32xf32>
    %37 = arith.mulf %36, %32 : vector<16x32xf32>
    %38 = arith.mulf %37, %32 : vector<16x32xf32>
    %39 = arith.addf %32, %38 : vector<16x32xf32>
    %cst_17 = arith.constant 0.797884583 : f32
    %40 = vector.broadcast %cst_17 : f32 to vector<16x32xf32>
    %41 = arith.mulf %40, %39 : vector<16x32xf32>
    %42 = math.tanh %41 : vector<16x32xf32>
    %cst_18 = arith.constant 1.000000e+00 : f32
    %43 = vector.broadcast %cst_18 : f32 to vector<16x32xf32>
    %44 = arith.addf %43, %42 : vector<16x32xf32>
    %45 = arith.mulf %34, %44 : vector<16x32xf32>
    %46 = vector.shape_cast %45 : vector<16x32xf32> to vector<2x8x32xf32>
    %c0_19 = arith.constant 0 : index
    %c0_20 = arith.constant 0 : index
    %47 = vector.load %arg7[%c0_19, %c0_20] : memref<1x32xf32, #tpu.memory_space<vmem>>, vector<1x32xf32>
    %48 = vector.shape_cast %47 : vector<1x32xf32> to vector<1x1x32xf32>
    %49 = vector.broadcast %48 : vector<1x1x32xf32> to vector<2x8x32xf32>
    %50 = arith.mulf %46, %49 : vector<2x8x32xf32>
    %cst_21 = arith.constant dense<0.000000e+00> : vector<2x8xf32>
    %51 = vector.multi_reduction <add>, %50, %cst_21 [2] : vector<2x8x32xf32> to vector<2x8xf32>
    %c0_22 = arith.constant 0 : index
    %c0_23 = arith.constant 0 : index
    %52 = vector.load %arg2[%c0_22, %c0_23] : memref<2x8xf32, #tpu.memory_space<vmem>>, vector<2x8xf32>
    %cst_24 = arith.constant 1.000000e+00 : f32
    %53 = vector.broadcast %cst_24 : f32 to vector<2x8xf32>
    %54 = arith.subf %52, %53 : vector<2x8xf32>
    %cst_25 = arith.constant 1.000000e+30 : f32
    %55 = vector.broadcast %cst_25 : f32 to vector<2x8xf32>
    %56 = arith.mulf %54, %55 : vector<2x8xf32>
    %57 = arith.addf %51, %56 : vector<2x8xf32>
    %cst_26 = arith.constant dense<0xFF800000> : vector<2xf32>
    %58 = vector.multi_reduction <maximumf>, %57, %cst_26 [1] : vector<2x8xf32> to vector<2xf32>
    %59 = vector.shape_cast %58 : vector<2xf32> to vector<2x1xf32>
    %60 = vector.broadcast %59 : vector<2x1xf32> to vector<2x8xf32>
    %61 = arith.subf %57, %60 : vector<2x8xf32>
    %62 = math.exp %61 : vector<2x8xf32>
    %cst_27 = arith.constant dense<0.000000e+00> : vector<2xf32>
    %63 = vector.multi_reduction <add>, %62, %cst_27 [1] : vector<2x8xf32> to vector<2xf32>
    %64 = vector.shape_cast %63 : vector<2xf32> to vector<2x1xf32>
    %65 = tpu.reciprocal %64 {approx = true} : vector<2x1xf32> -> vector<2x1xf32>
    %66 = vector.broadcast %65 : vector<2x1xf32> to vector<2x8xf32>
    %67 = arith.mulf %62, %66 : vector<2x8xf32>
    %68 = vector.shape_cast %67 : vector<2x8xf32> to vector<2x1x8xf32>
    %69 = arith.truncf %68 : vector<2x1x8xf32> to vector<2x1x8xbf16>
    "tpu.trace_start"() <{level = 10 : i32, message = "bqs,bsh->bqh"}> : () -> ()
    %cst_28 = arith.constant dense<0.000000e+00> : vector<2x1x32xf32>
    %70 = tpu.matmul %69, %0, %cst_28 {dimension_numbers = #tpu.dot_dimension_numbers<[2], [1], [1], [2], [0, 0, 0, 1, 1, 2], [0], [0]>} : vector<2x1x8xbf16>, vector<2x8x32xbf16>, vector<2x1x32xf32> -> vector<2x1x32xf32>
    "tpu.trace_stop"() : () -> ()
    %71 = vector.shape_cast %70 : vector<2x1x32xf32> to vector<2x32xf32>
    %72 = arith.truncf %71 : vector<2x32xf32> to vector<2x32xbf16>
    %c0_29 = arith.constant 0 : index
    %c0_30 = arith.constant 0 : index
    %73 = vector.load %arg8[%c0_29, %c0_30] : memref<32x128xbf16, #tpu.memory_space<vmem>>, vector<32x128xbf16>
    %cst_31 = arith.constant dense<0.000000e+00> : vector<2x128xf32>
    %74 = tpu.matmul %72, %73, %cst_31 {dimension_numbers = #tpu.dot_dimension_numbers<[1], [0], [0], [1], [0, 0, 1, 1], [], []>} : vector<2x32xbf16>, vector<32x128xbf16>, vector<2x128xf32> -> vector<2x128xf32>
    %c0_32 = arith.constant 0 : index
    %c0_33 = arith.constant 0 : index
    %75 = vector.load %arg9[%c0_32, %c0_33] : memref<1x128xf32, #tpu.memory_space<vmem>>, vector<1x128xf32>
    %76 = vector.broadcast %75 : vector<1x128xf32> to vector<2x128xf32>
    %77 = arith.addf %74, %76 : vector<2x128xf32>
    %cst_34 = arith.constant 0.000000e+00 : f32
    %78 = vector.broadcast %cst_34 : f32 to vector<2x128xf32>
    %79 = arith.maximumf %77, %78 : vector<2x128xf32>
    %c0_35 = arith.constant 0 : index
    %c0_36 = arith.constant 0 : index
    %80 = vector.load %arg10[%c0_35, %c0_36] : memref<2x128xf32, #tpu.memory_space<vmem>>, vector<2x128xf32>
    tpu.vector_store %arg10[%c0_35, %c0_36], %79 {strides = array<i32>} : memref<2x128xf32, #tpu.memory_space<vmem>>, vector<2x128xf32>,
    return
  }
  func.func @transform_0(%arg0: i32) -> (i32, i32, i32) {
    %c0_i32 = arith.constant 0 : i32
    %c0_i32_0 = arith.constant 0 : i32
    %c0_i32_1 = arith.constant 0 : i32
    return %arg0, %c0_i32, %c0_i32_0 : i32, i32, i32
  }
  func.func @transform_1(%arg0: i32) -> (i32, i32) {
    %c0_i32 = arith.constant 0 : i32
    %c0_i32_0 = arith.constant 0 : i32
    return %arg0, %c0_i32 : i32, i32
  }
  func.func @transform_2(%arg0: i32) -> (i32, i32) {
    %c0_i32 = arith.constant 0 : i32
    %c0_i32_0 = arith.constant 0 : i32
    %c0_i32_1 = arith.constant 0 : i32
    return %c0_i32, %c0_i32_0 : i32, i32
  }
  func.func @transform_3(%arg0: i32) -> (i32, i32) {
    %c0_i32 = arith.constant 0 : i32
    %c0_i32_0 = arith.constant 0 : i32
    %c0_i32_1 = arith.constant 0 : i32
    return %c0_i32, %c0_i32_0 : i32, i32
  }
  func.func @transform_4(%arg0: i32) -> (i32, i32) {
    %c0_i32 = arith.constant 0 : i32
    %c0_i32_0 = arith.constant 0 : i32
    %c0_i32_1 = arith.constant 0 : i32
    return %c0_i32, %c0_i32_0 : i32, i32
  }
  func.func @transform_5(%arg0: i32) -> (i32, i32) {
    %c0_i32 = arith.constant 0 : i32
    %c0_i32_0 = arith.constant 0 : i32
    %c0_i32_1 = arith.constant 0 : i32
    return %c0_i32, %c0_i32_0 : i32, i32
  }
  func.func @transform_6(%arg0: i32) -> (i32, i32) {
    %c0_i32 = arith.constant 0 : i32
    %c0_i32_0 = arith.constant 0 : i32
    %c0_i32_1 = arith.constant 0 : i32
    return %c0_i32, %c0_i32_0 : i32, i32
  }
  func.func @transform_7(%arg0: i32) -> (i32, i32) {
    %c0_i32 = arith.constant 0 : i32
    %c0_i32_0 = arith.constant 0 : i32
    %c0_i32_1 = arith.constant 0 : i32
    return %c0_i32, %c0_i32_0 : i32, i32
  }
  func.func @transform_8(%arg0: i32) -> (i32, i32) {
    %c0_i32 = arith.constant 0 : i32
    %c0_i32_0 = arith.constant 0 : i32
    %c0_i32_1 = arith.constant 0 : i32
    return %c0_i32, %c0_i32_0 : i32, i32
  }
  func.func @transform_9(%arg0: i32) -> (i32, i32) {
    %c0_i32 = arith.constant 0 : i32
    %c0_i32_0 = arith.constant 0 : i32
    return %arg0, %c0_i32 : i32, i32
  }
}

</mosaic_0001>

<llo_original>
// kernel: tpu_custom_call.1
$region0: #{tpu_custom_call.1}
  #allocation0 [shape = 'u32[]', space=smem, size = 0x4, offset = 0x4, fixed_abs, tag = 'smem constant byte address 0x4 - core index']
  #allocation1 [shape = 'u32[72,128]{1,0:T(1,128)}', space=vmem, size = 0x9000, scoped, tag = 'internal scratch']
  %s0 = inlined_call_operand.hbm [shape: bf16[2,8,32], index: 0, kind: input, shape index: {}]
  %s1 = inlined_call_operand.hbm [shape: f32[2,8], index: 1, kind: input, shape index: {}]
  %s2 = inlined_call_operand.hbm [shape: bf16[32,32], index: 2, kind: input, shape index: {}]
  %s3 = inlined_call_operand.vmem [shape: f32[1,32], index: 3, kind: input, shape index: {}]
  %s4 = inlined_call_operand.vmem [shape: f32[1,32], index: 4, kind: input, shape index: {}]
  %s5 = inlined_call_operand.vmem [shape: f32[1,32], index: 5, kind: input, shape index: {}]
  %s6 = inlined_call_operand.vmem [shape: f32[1,32], index: 6, kind: input, shape index: {}]
  %s7 = inlined_call_operand.hbm [shape: bf16[32,128], index: 7, kind: input, shape index: {}]
  %s8 = inlined_call_operand.vmem [shape: f32[1,128], index: 8, kind: input, shape index: {}]
  %s9 = inlined_call_operand.hbm [shape: f32[2,128], index: 9, kind: output, shape index: {}]
  %s10 = sld [smem:[#allocation0]]
  $region62: #{tpu_custom_call.1} parent=0
    _
  %s12 = ssub.s32 1, %s10
  %s13 = scalar_select 0, %s12, %s10
  $region1: #{tpu_custom_call.1} parent=0
    #allocation2 [shape = 'u8[4096]{0}', space=vmem, size = 0x1000, scoped, tag = 'input window, operand 0, single buffered']
    #allocation3 [shape = 's32[1]{0}', space=sflag, size = 0x4, scoped, tag = 'scoped memory for tpu_custom_call.1']
    #allocation4 [shape = 's32[1]{0}', space=sflag, size = 0x4, scoped, tag = 'scoped memory for tpu_custom_call.1']
    #allocation5 [shape = 'u8[1024]{0}', space=vmem, size = 0x400, scoped, tag = 'input window, operand 1, single buffered']
    #allocation6 [shape = 's32[1]{0}', space=sflag, size = 0x4, scoped, tag = 'scoped memory for tpu_custom_call.1']
    #allocation7 [shape = 'u8[8192]{0}', space=vmem, size = 0x2000, scoped, tag = 'input window, operand 2, single buffered']
    #allocation8 [shape = 'u8[8192]{0}', space=vmem, size = 0x2000, scoped, tag = 'input window, operand 7, single buffered']
    #allocation9 [shape = 's32[1]{0}', space=sflag, size = 0x4, scoped, tag = 'scoped memory for tpu_custom_call.1']
    #allocation10 [shape = 'u8[1024]{0}', space=vmem, size = 0x400, scoped, tag = 'output window, operand 0, single buffered']
    %14 = vsyncpa [#allocation3], 0
    %15 = vsyncpa [#allocation6], 0
    %16 = vsyncpa [#allocation9], 0
    %17 = vsyncpa [#allocation4], 0
    // Predicated region
    $region2: #{tpu_custom_call.1} parent=1 // pred_check
      _
    $region3: #{tpu_custom_call.1} parent=1 // pred_check_branch
      %19 = sbr.rel (0) target = $region5
    $region4: #{tpu_custom_call.1} parent=1 // pred_region
      %21 = vsyncadd [#allocation3], 0
      %s22 = sshll.u32 %s0, 4
      %s23 = int_to_ptr.hbm [resolvable:$true] %s22
      %s24 = sshll.u32 [#allocation2], 4
      %s25 = int_to_ptr.vmem [resolvable:$true] %s24
      %30 = dma.hbm_to_vmem [thread:$0]  %s23, 128, %s25, [#allocation3], 64, 64, 4
    $region5: #{tpu_custom_call.1} parent=1 // pred_fallthru
      _
    // Predicated region
    $region6: #{tpu_custom_call.1} parent=1 // pred_check
      _
    $region7: #{tpu_custom_call.1} parent=1 // pred_check_branch
      %32 = sbr.rel (0) target = $region9
    $region8: #{tpu_custom_call.1} parent=1 // pred_region
      %34 = vsyncadd [#allocation6], 0
      %s36 = sshll.u32 %s1, 4
      %s37 = int_to_ptr.hbm [resolvable:$true] %s36
      %s38 = sshll.u32 [#allocation5], 4
      %s39 = int_to_ptr.vmem [resolvable:$true] %s38
      %41 = dma.hbm_to_vmem [thread:$0]  %s37, 32, %s39, [#allocation6]
    $region9: #{tpu_custom_call.1} parent=1 // pred_fallthru
      _
    // Predicated region
    $region10: #{tpu_custom_call.1} parent=1 // pred_check
      _
    $region11: #{tpu_custom_call.1} parent=1 // pred_check_branch
      %43 = sbr.rel (0) target = $region13
    $region12: #{tpu_custom_call.1} parent=1 // pred_region
      %45 = vsyncadd [#allocation6], 0
      %s46 = sshll.u32 %s2, 4
      %s47 = int_to_ptr.hbm [resolvable:$true] %s46
      %s48 = sshll.u32 [#allocation7], 4
      %s49 = int_to_ptr.vmem [resolvable:$true] %s48
      %54 = dma.hbm_to_vmem [thread:$0]  %s47, 256, %s49, [#allocation6], 64, 64, 4
    $region13: #{tpu_custom_call.1} parent=1 // pred_fallthru
      _
    // Predicated region
    $region14: #{tpu_custom_call.1} parent=1 // pred_check
      _
    $region15: #{tpu_custom_call.1} parent=1 // pred_check_branch
      %56 = sbr.rel (0) target = $region17
    $region16: #{tpu_custom_call.1} parent=1 // pred_region
      _
    $region17: #{tpu_custom_call.1} parent=1 // pred_fallthru
      _
    // Predicated region
    $region18: #{tpu_custom_call.1} parent=1 // pred_check
      _
    $region19: #{tpu_custom_call.1} parent=1 // pred_check_branch
      %58 = sbr.rel (0) target = $region21
    $region20: #{tpu_custom_call.1} parent=1 // pred_region
      _
    $region21: #{tpu_custom_call.1} parent=1 // pred_fallthru
      _
    // Predicated region
    $region22: #{tpu_custom_call.1} parent=1 // pred_check
      _
    $region23: #{tpu_custom_call.1} parent=1 // pred_check_branch
      %60 = sbr.rel (0) target = $region25
    $region24: #{tpu_custom_call.1} parent=1 // pred_region
      _
    $region25: #{tpu_custom_call.1} parent=1 // pred_fallthru
      _
    // Predicated region
    $region26: #{tpu_custom_call.1} parent=1 // pred_check
      _
    $region27: #{tpu_custom_call.1} parent=1 // pred_check_branch
      %62 = sbr.rel (0) target = $region29
    $region28: #{tpu_custom_call.1} parent=1 // pred_region
      _
    $region29: #{tpu_custom_call.1} parent=1 // pred_fallthru
      _
    // Predicated region
    $region30: #{tpu_custom_call.1} parent=1 // pred_check
      _
    $region31: #{tpu_custom_call.1} parent=1 // pred_check_branch
      %64 = sbr.rel (0) target = $region33
    $region32: #{tpu_custom_call.1} parent=1 // pred_region
      %66 = vsyncadd [#allocation9], 0
      %s67 = sshll.u32 %s7, 4
      %s68 = int_to_ptr.hbm [resolvable:$true] %s67
      %s69 = sshll.u32 [#allocation8], 4
      %s70 = int_to_ptr.vmem [resolvable:$true] %s69
      %75 = dma.hbm_to_vmem [thread:$0]  %s68, 256, %s70, [#allocation9], 64, 64, 4
    $region33: #{tpu_custom_call.1} parent=1 // pred_fallthru
      _
    // Predicated region
    $region34: #{tpu_custom_call.1} parent=1 // pred_check
      _
    $region35: #{tpu_custom_call.1} parent=1 // pred_check_branch
      %77 = sbr.rel (0) target = $region37
    $region36: #{tpu_custom_call.1} parent=1 // pred_region
      _
    $region37: #{tpu_custom_call.1} parent=1 // pred_fallthru
      _
    // Predicated region
    $region38: #{tpu_custom_call.1} parent=1 // pred_check
      _
    $region39: #{tpu_custom_call.1} parent=1 // pred_check_branch
      %79 = sbr.rel (0) target = $region41
    $region40: #{tpu_custom_call.1} parent=1 // pred_region
      %81 = dma.done [#allocation3], 128
    $region41: #{tpu_custom_call.1} parent=1 // pred_fallthru
      _
    // Predicated region
    $region42: #{tpu_custom_call.1} parent=1 // pred_check
      _
    $region43: #{tpu_custom_call.1} parent=1 // pred_check_branch
      %83 = sbr.rel (0) target = $region45
    $region44: #{tpu_custom_call.1} parent=1 // pred_region
      %85 = dma.done [#allocation6], 32
    $region45: #{tpu_custom_call.1} parent=1 // pred_fallthru
      _
    // Predicated region
    $region46: #{tpu_custom_call.1} parent=1 // pred_check
      _
    $region47: #{tpu_custom_call.1} parent=1 // pred_check_branch
      %87 = sbr.rel (0) target = $region49
    $region48: #{tpu_custom_call.1} parent=1 // pred_region
      %89 = dma.done [#allocation6], 256
    $region49: #{tpu_custom_call.1} parent=1 // pred_fallthru
      _
    // Predicated region
    $region50: #{tpu_custom_call.1} parent=1 // pred_check
      _
    $region51: #{tpu_custom_call.1} parent=1 // pred_check_branch
      %91 = sbr.rel (0) target = $region53
    $region52: #{tpu_custom_call.1} parent=1 // pred_region
      %93 = dma.done [#allocation9], 256
    $region53: #{tpu_custom_call.1} parent=1 // pred_fallthru
      _
    %v95 = vld [vmem:[#allocation2] sm:$0xf]
    %v96 = vld [vmem:[#allocation2 + $0x4] sm:$0xf]
    %v97 = vld [vmem:[#allocation7] sm:$0xf]
    %v98 = vld [vmem:[#allocation7 + $0x4] sm:$0xf]
    %v99 = vld [vmem:[#allocation7 + $0x8] sm:$0xf]
    %v100 = vld [vmem:[#allocation7 + $0xc] sm:$0xf]
    %v101 = vld [vmem:[%s3] sm:$0x1]
    %v103 = vperm.slane %v101, 0
    %v107 = vunpack.c.l.b16 %v95
    %v108 = vunpack.c.l.b16 %v96
    %v109 = vpack.c.b16 %v108, %v107
    %v114 = vunpack.c.l.b16 %v97
    %v115 = vunpack.c.l.b16 %v98
    %v116 = vunpack.c.l.b16 %v99
    %v117 = vunpack.c.l.b16 %v100
    %v118 = vpack.c.b16 %v115, %v114
    %v119 = vpack.c.b16 %v117, %v116
    %vm122 = vcmask 261120
    %v124 = vsel %vm122, %v109, 0
    %126 = vmatpush.bf16.msra.mxu0 0
    %127 = vmatpush.bf16.msra.mxu0 0
    %128 = vmatpush.bf16.msra.mxu0 0
    %129 = vmatpush.bf16.msra.mxu0 0
    %130 = vmatpush.bf16.msra.mxu0 0
    %131 = vmatpush.bf16.msra.mxu0 0
    %132 = vmatpush.bf16.msra.mxu0 %v119
    %133 = vmatpush.bf16.msra.mxu0 %v118
    %134 = vmatmul.bf16.gmra.mxu0 %v124
    %v135 = vpop.f32.mrf.mxu0
    %v136 = vadd.f32 %v103, %v135
    %v137 = vpop.f32.mrf.mxu0
    %v138 = vadd.f32 %v103, %v137
    %139 = vdwg.mxu0
    %v140 = vsel %vm122, %v136, 0.0
    %141 = vadd.xlane.f32.xlu0 %v140
    %v142 = vpop.xlane.xlu0 %141
    %v143 = vsel %vm122, %v138, 0.0
    %144 = vadd.xlane.f32.xlu0 %v143
    %v145 = vpop.xlane.xlu0 %144
    %v146 = vrcp.pop 32.0
    %v147 = vmul.f32 32.0, %v146
    %v148 = vsub.f32 1.0, %v147
    %v149 = vmul.f32 %v146, %v148
    %v150 = vadd.f32 %v146, %v149
    %vm151 = vweird.f32 %v146
    %v152 = vsel %vm151, %v146, %v150
    %v153 = vmul.f32 %v142, %v152
    %v154 = vmul.f32 %v145, %v152
    %v155 = vsub.f32 %v136, %v153
    %v156 = vsub.f32 %v138, %v154
    %v157 = vmul.f32 %v155, %v155
    %v158 = vmul.f32 %v156, %v156
    %v159 = vsel %vm122, %v157, 0.0
    %160 = vadd.xlane.f32.xlu0 %v159
    %v161 = vpop.xlane.xlu0 %160
    %v162 = vsel %vm122, %v158, 0.0
    %163 = vadd.xlane.f32.xlu0 %v162
    %v164 = vpop.xlane.xlu0 %163
    %v165 = vmul.f32 %v161, %v152
    %v166 = vmul.f32 %v164, %v152
    %v167 = vadd.f32 %v165, 1e-05
    %v168 = vadd.f32 %v166, 1e-05
    %v169 = vrsqrt.pop %v167
    %v170 = vmul.f32 %v169, %v167
    %v171 = vmul.f32 %v170, %v169
    %v172 = vmul.f32 0.5, %v171
    %v173 = vsub.f32 1.5, %v172
    %v174 = vmul.f32 %v169, %v173
    %vm175 = vweird.f32 %v167
    %vm176 = vweird.f32 %v169
    %vm177 = vmor %vm175, %vm176
    %v178 = vsel %vm177, %v169, %v174
    %v179 = vrsqrt.pop %v168
    %v180 = vmul.f32 %v179, %v168
    %v181 = vmul.f32 %v180, %v179
    %v182 = vmul.f32 0.5, %v181
    %v183 = vsub.f32 1.5, %v182
    %v184 = vmul.f32 %v179, %v183
    %vm185 = vweird.f32 %v168
    %vm186 = vweird.f32 %v179
    %vm187 = vmor %vm185, %vm186
    %v188 = vsel %vm187, %v179, %v184
    %v189 = vmul.f32 %v155, %v178
    %v190 = vmul.f32 %v156, %v188
    %v191 = vld [vmem:[%s4] sm:$0x1]
    %v193 = vperm.slane %v191, 0
    %v195 = vmul.f32 %v189, %v193
    %v196 = vmul.f32 %v190, %v193
    %v197 = vld [vmem:[%s5] sm:$0x1]
    %v199 = vperm.slane %v197, 0
    %v201 = vadd.f32 %v195, %v199
    %v202 = vadd.f32 %v196, %v199
    %v203 = vmul.f32 %v201, 0.5
    %v204 = vmul.f32 %v202, 0.5
    %v205 = vmul.f32 %v201, 0.044715
    %v206 = vmul.f32 %v202, 0.044715
    %v207 = vmul.f32 %v205, %v201
    %v208 = vmul.f32 %v206, %v202
    %v209 = vmul.f32 %v207, %v201
    %v210 = vmul.f32 %v208, %v202
    %v211 = vadd.f32 %v201, %v209
    %v212 = vadd.f32 %v202, %v210
    %v213 = vmul.f32 %v211, 0.7978846
    %v214 = vmul.f32 %v212, 0.7978846
    %v215 = vtanh.pop %v213
    %v216 = vtanh.pop %v214
    %v217 = vadd.f32 %v215, 1.0
    %v218 = vadd.f32 %v216, 1.0
    %v219 = vmul.f32 %v203, %v217
    %v220 = vmul.f32 %v204, %v218
    %v221 = vld [vmem:[%s6] sm:$0x1]
    %v223 = vperm.slane %v221, 0
    %v225 = vmul.f32 %v219, %v223
    %v226 = vmul.f32 %v220, %v223
    %v227 = vsel %vm122, %v225, 0.0
    %228 = vadd.xlane.f32.xlu0 %v227
    %v229 = vpop.xlane.xlu0 %228
    %v230 = vsel %vm122, %v226, 0.0
    %231 = vadd.xlane.f32.xlu0 %v230
    %v232 = vpop.xlane.xlu0 %231
    %v233 = vld [vmem:[#allocation5] sm:$0x3]
    %v234 = vsub.f32 %v233, 1.0
    %v235 = vmul.f32 %v234, 1e+30
    %v237 = vperm.slane %v235, 0
    %v238 = vlaneseq
    %v239 = vshrl.u32 %v238, 7
    %241 = vset.pattern.permute.xlu0 %v239
    %242 = vperm.xlu0 %241, %v237
    %v243 = vpop.permute.xlu0 %242
    %v244 = vperm.slane %v235, 1
    %v245 = vlaneseq
    %v246 = vshrl.u32 %v245, 7
    %248 = vset.pattern.permute.xlu0 %v246
    %249 = vperm.xlu0 %248, %v244
    %v250 = vpop.permute.xlu0 %249
    %v253 = vadd.f32 %v229, %v243
    %v254 = vadd.f32 %v232, %v250
    %257 = vset.pattern.permute.xlu0 0
    %258 = vperm.xlu0 %257, %v253
    %v259 = vpop.permute.xlu0 %258
    %260 = vset.pattern.permute.xlu0 0
    %261 = vperm.xlu0 %260, %v254
    %v262 = vpop.permute.xlu0 %261
    %v263 = vlaneseq
    %v264 = vand.u32 %v263, 127
    %v265 = vperm.slane %v259, %v264
    %v266 = vperm.slane %v262, %v264
    %vm267 = vcmask 1041409
    %v268 = vsel %vm267, %v266, %v265
    %vm270 = vcmask 58368
    %v271 = vsel %vm270, %v268, -inf
    %272 = vmax.xlane.f32.xlu0 %v271
    %v273 = vpop.xlane.xlu0 %272
    %v275 = vperm.slane %v273, 0
    %v276 = vperm.slane %v273, 1
    %v279 = vsub.f32 %v253, %v275
    %v280 = vsub.f32 %v254, %v276
    %v281 = vmul.f32 %v279, 1.442695
    %v282 = vpow.pop %v281
    %v283 = vmul.f32 %v280, 1.442695
    %v284 = vpow.pop %v283
    %287 = vset.pattern.permute.xlu0 0
    %288 = vperm.xlu0 %287, %v282
    %v289 = vpop.permute.xlu0 %288
    %290 = vset.pattern.permute.xlu0 0
    %291 = vperm.xlu0 %290, %v284
    %v292 = vpop.permute.xlu0 %291
    %v293 = vperm.slane %v289, %v264
    %v294 = vperm.slane %v292, %v264
    %v295 = vsel %vm267, %v294, %v293
    %v297 = vsel %vm270, %v295, 0.0
    %298 = vadd.xlane.f32.xlu0 %v297
    %v299 = vpop.xlane.xlu0 %298
    %v300 = vrcp.pop %v299
    %v302 = vperm.slane %v300, 0
    %v303 = vperm.slane %v300, 1
    %v306 = vmul.f32 %v282, %v302
    %v307 = vmul.f32 %v284, %v303
    %v308 = vpack.c.bf16 %v306, %v306
    %v309 = vpack.c.bf16 %v307, %v307
    %v311 = vunpack.c.l.b16 %v308
    %v312 = vpack.c.b16 %v311, %v311
    %v313 = vunpack.c.l.b16 %v312
    %314 = vset.pattern.permute.xlu0 0
    %315 = vperm.xlu0 %314, %v313
    %v316 = vpop.permute.xlu0 %315
    %v317 = vperm.slane %v316, %v264
    %v318 = vpack.c.b16 %v317, %v317
    %vm319 = vcmask 64512
    %v321 = vsel %vm319, %v318, 0
    %vm323 = vcmask 1043456
    %v325 = vsel %vm323, %v95, 0
    %327 = vmatpush.bf16.msra.mxu0 0
    %328 = vmatpush.bf16.msra.mxu0 0
    %329 = vmatpush.bf16.msra.mxu0 0
    %330 = vmatpush.bf16.msra.mxu0 0
    %331 = vmatpush.bf16.msra.mxu0 0
    %332 = vmatpush.bf16.msra.mxu0 0
    %333 = vmatpush.bf16.msra.mxu0 0
    %334 = vmatpush.bf16.msra.mxu0 %v325
    %335 = vmatmul.bf16.gmra.mxu0 %v321
    %v336 = vpop.f32.mrf.mxu0
    %v337 = vadd.f32 0.0, %v336
    %v338 = vpop.f32.mrf.mxu0
    %339 = vdwg.mxu0
    %v341 = vunpack.c.l.b16 %v309
    %v342 = vpack.c.b16 %v341, %v341
    %v343 = vunpack.c.l.b16 %v342
    %344 = vset.pattern.permute.xlu0 0
    %345 = vperm.xlu0 %344, %v343
    %v346 = vpop.permute.xlu0 %345
    %v347 = vperm.slane %v346, %v264
    %v348 = vpack.c.b16 %v347, %v347
    %v350 = vsel %vm319, %v348, 0
    %v353 = vsel %vm323, %v96, 0
    %355 = vmatpush.bf16.msra.mxu0 0
    %356 = vmatpush.bf16.msra.mxu0 0
    %357 = vmatpush.bf16.msra.mxu0 0
    %358 = vmatpush.bf16.msra.mxu0 0
    %359 = vmatpush.bf16.msra.mxu0 0
    %360 = vmatpush.bf16.msra.mxu0 0
    %361 = vmatpush.bf16.msra.mxu0 0
    %362 = vmatpush.bf16.msra.mxu0 %v353
    %363 = vmatmul.bf16.gmra.mxu0 %v350
    %v364 = vpop.f32.mrf.mxu0
    %v365 = vadd.f32 0.0, %v364
    %v366 = vpop.f32.mrf.mxu0
    %367 = vdwg.mxu0
    %v368 = vpack.c.bf16 %v337, %v337
    %v369 = vpack.c.bf16 %v365, %v365
    %v370 = vld [vmem:[#allocation8] sm:$0xf]
    %v371 = vld [vmem:[#allocation8 + $0x4] sm:$0xf]
    %v372 = vld [vmem:[#allocation8 + $0x8] sm:$0xf]
    %v373 = vld [vmem:[#allocation8 + $0xc] sm:$0xf]
    %v374 = vld [vmem:[%s8] sm:$0x1]
    %v376 = vperm.slane %v374, 0
    %v380 = vunpack.c.l.b16 %v368
    %v381 = vunpack.c.l.b16 %v369
    %v382 = vrot.slane %v381, 7
    %v383 = vsel %vm267, %v382, %v380
    %v384 = vpack.c.b16 %v383, %v383
    %v389 = vunpack.c.l.b16 %v370
    %v390 = vunpack.c.l.b16 %v371
    %v391 = vunpack.c.l.b16 %v372
    %v392 = vunpack.c.l.b16 %v373
    %v393 = vpack.c.b16 %v390, %v389
    %v394 = vpack.c.b16 %v392, %v391
    %v398 = vsel %vm122, %v384, 0
    %400 = vmatpush.bf16.msra.mxu0 0
    %401 = vmatpush.bf16.msra.mxu0 0
    %402 = vmatpush.bf16.msra.mxu0 0
    %403 = vmatpush.bf16.msra.mxu0 0
    %404 = vmatpush.bf16.msra.mxu0 0
    %405 = vmatpush.bf16.msra.mxu0 0
    %406 = vmatpush.bf16.msra.mxu0 %v394
    %407 = vmatpush.bf16.msra.mxu0 %v393
    %408 = vmatmul.bf16.gmra.mxu0 %v398
    %v409 = vpop.f32.mrf.mxu0
    %v410 = vadd.f32 %v376, %v409
    %v411 = vpop.f32.mrf.mxu0
    %412 = vdwg.mxu0
    %v413 = vmax.f32 %v410, 0.0
    %414 = vst [vmem:[#allocation10] sm:$0x3] %v413
    // Predicated region
    $region54: #{tpu_custom_call.1} parent=1 // pred_check
      _
    $region55: #{tpu_custom_call.1} parent=1 // pred_check_branch
      %416 = sbr.rel (0) target = $region57
    $region56: #{tpu_custom_call.1} parent=1 // pred_region
      %418 = vsyncadd [#allocation4], 0
      %s420 = sshll.u32 [#allocation10], 4
      %s421 = int_to_ptr.vmem [resolvable:$true] %s420
      %s422 = sshll.u32 %s9, 4
      %s423 = int_to_ptr.hbm [resolvable:$true] %s422
      %425 = dma.vmem_to_hbm [thread:$0]  %s421, 32, %s423, [#allocation4]
    $region57: #{tpu_custom_call.1} parent=1 // pred_fallthru
      _
    // Predicated region
    $region58: #{tpu_custom_call.1} parent=1 // pred_check
      _
    $region59: #{tpu_custom_call.1} parent=1 // pred_check_branch
      %427 = sbr.rel (0) target = $region61
    $region60: #{tpu_custom_call.1} parent=1 // pred_region
      %429 = dma.done [#allocation4], 32
    $region61: #{tpu_custom_call.1} parent=1 // pred_fallthru
      _
    %430 = vsyncpa [#allocation3], 1
    %431 = vsyncpa [#allocation6], 1
    %432 = vsyncpa [#allocation9], 1
    %433 = vsyncpa [#allocation4], 1

</llo_original>
